<compile_context>
chip_gen: v6e
topology: v6e:2x2x1
jax: 0.10.0
libtpu: 0.0.40
codegen_flags: <defaults>
</compile_context>

<pallas_src>
import functools

import jax
import jax.numpy as jnp
from jax.experimental import pallas as pl
from jax.experimental.pallas import tpu as pltpu


# -----------------------------------------------------------------------------
# pltpu.roll rotation-direction check (runs once at import, zero per-call cost).
# The folded W-axis wrap fix depends on the direction; pltpu.roll is expected to
# behave like jnp.roll (out[i] = in[i - shift]) and we verify that so the kernel
# is robust either way.
# -----------------------------------------------------------------------------
def _roll_probe_kernel(x_ref, o_ref):
    o_ref[...] = pltpu.roll(x_ref[...], 1, axis=1)


def _detect_roll_is_jnp_like():
    x = jax.lax.broadcasted_iota(jnp.float32, (8, 128), 1)
    y = pl.pallas_call(
        _roll_probe_kernel,
        out_shape=jax.ShapeDtypeStruct((8, 128), jnp.float32),
    )(x)
    return bool(y[0, 1] == 0.0)


_ROLL_IS_JNP_LIKE = _detect_roll_is_jnp_like()


def _lane_roll(v, shift):
    """jnp.roll(v, shift, axis=-1) on the lane axis via the XLU."""
    size = v.shape[-1]
    shift = shift % size
    if shift == 0:
        return v
    if not _ROLL_IS_JNP_LIKE:
        shift = size - shift
    return pltpu.roll(v, shift, axis=v.ndim - 1)


def _pick_tile_d(depth, folded, budget_bytes=3 << 19):
    """Largest D tile (divisor of depth; multiple of 8 or full) with <= ~1.5 MiB f32 rows."""
    max_rows = max(1, budget_bytes // (folded * 4))
    if depth <= max_rows:
        return depth
    best = None
    for cand in range(8, depth, 8):
        if depth % cand == 0 and cand <= max_rows:
            best = cand
    # No 8-aligned divisor fits the budget: fall back to a single whole-D tile.
    return best if best is not None else depth


def _gradient_loss_kernel(x_ref, up_ref, dn_ref, wpos_ref, sum_ref, cnt_ref, *, w):
    x = x_ref[0]                                    # (TD, L), L = H*W (lane-dense fold)
    l = x.shape[-1]
    up = up_ref[...].reshape(1, l)                  # depth row (start - 1) mod D
    dn = dn_ref[...].reshape(1, l)                  # depth row (start + TD) mod D
    wpos = wpos_ref[...]                            # (1, L) int32: lane index mod W

    # ---- W axis (fast axis of the fold): forward diff reused for the backward term;
    #      the wrap at each W-row boundary is patched with a select. ----
    on_w_last = wpos == (w - 1)
    on_w_first = wpos == 0
    x_wnext = jnp.where(on_w_last, _lane_roll(x, w - 1), _lane_roll(x, l - 1))
    d_w = jnp.abs(x_wnext - x)
    d_w_up = jnp.where(on_w_first, _lane_roll(d_w, l - w + 1), _lane_roll(d_w, 1))
    g_w = d_w + d_w_up

    # ---- H axis: a stride-W roll of the folded axis wraps exactly like the H axis. ----
    d_h = jnp.abs(_lane_roll(x, l - w) - x)
    g_h = d_h + _lane_roll(d_h, w)

    # ---- D axis: circular halo rows supply the wrap; forward diffs reused. ----
    x_ext = jnp.concatenate([up, x, dn], axis=0)    # (TD + 2, L)
    d_d = jnp.abs(x_ext[1:] - x_ext[:-1])           # (TD + 1, L)
    g_d = d_d[1:] + d_d[:-1]                        # (TD, L)

    # sqrt(clip(.))**2 == clip(.) to ~1 ulp: skip the sqrt/square round trip.
    val = jnp.clip(g_w * g_w + g_h * g_h + g_d * g_d, 1e-5, 1000.0)
    sel = x > 0.001

    sum_ref[0, 0, 0, 0] = jnp.sum(jnp.where(sel, val, 0.0))
    # Per-tile counts are far below 2^24, so the f32 reduction is exact; storing int32
    # keeps the cross-tile total (reduced outside the kernel) exact as well.
    cnt_ref[0, 0, 0, 0] = jnp.sum(sel.astype(jnp.float32)).astype(jnp.int32)


def gradient_loss(input_tensor, mask=None, *, tile_d=None):
    """JAX/Pallas equivalent of GradientLoss().forward(input_tensor, mask).

    `mask` is accepted for signature parity but unused (the PyTorch forward ignores it).
    The PyTorch host-side NaN guard (print + exit) is intentionally dropped per the
    performance review: NaNs propagate to a NaN loss and the wrapper stays jittable.
    """
    del mask
    n, c, d, h, w = input_tensor.shape
    b = n * c
    l = h * w                                            # lane-dense folded (H, W) axis
    x3 = input_tensor.reshape(b, d, l).astype(jnp.float32)
    x4 = x3.reshape(b, d, 1, l)                          # view used for the 1-row halos

    if tile_d is None:
        td = _pick_tile_d(d, l)
    else:
        td = int(tile_d)
        if d % td != 0 or (td != d and td % 8 != 0):
            raise ValueError("tile_d must divide D and be a multiple of 8 (or equal D)")
    nd = d // td

    # lane index modulo W, used for the W-axis wrap fix (built once, outside the kernel)
    wpos = (jnp.arange(l, dtype=jnp.int32) % w).reshape(1, l)

    sum_part, cnt_part = pl.pallas_call(
        functools.partial(_gradient_loss_kernel, w=w),
        out_shape=(
            jax.ShapeDtypeStruct((b, nd, 1, 1), jnp.float32),
            jax.ShapeDtypeStruct((b, nd, 1, 1), jnp.int32),
        ),
        grid_spec=pltpu.PrefetchScalarGridSpec(
            num_scalar_prefetch=0,
            grid=(b, nd),
            in_specs=[
                # (TD, L) tile of the folded volume
                pl.BlockSpec((1, td, l), lambda bi, di: (bi, di, 0)),
                # circular +/-1 depth halo rows (index_map performs the wrap)
                pl.BlockSpec((1, 1, 1, l),
                             lambda bi, di: (bi, (di * td + d - 1) % d, 0, 0)),
                pl.BlockSpec((1, 1, 1, l),
                             lambda bi, di: (bi, ((di + 1) * td) % d, 0, 0)),
                # lane % W helper row (constant across the grid)
                pl.BlockSpec((1, l), lambda bi, di: (0, 0)),
            ],
            out_specs=(
                pl.BlockSpec((1, 1, 1, 1), lambda bi, di: (bi, di, 0, 0)),
                pl.BlockSpec((1, 1, 1, 1), lambda bi, di: (bi, di, 0, 0)),
            ),
        ),
        compiler_params=pltpu.CompilerParams(
            dimension_semantics=("parallel", "parallel")),
    )(x3, x4, x4, wpos)

    total = jnp.sum(sum_part)
    count = jnp.sum(cnt_part)                 # exact int32 count of selected voxels
    # Mean over the selection; 0/0 -> NaN, matching torch.mean of an empty selection.
    return total / count.astype(jnp.float32)


def _reference(x5):
    """Pure-JAX transcription of the PyTorch module (self-check only)."""
    x = x5.astype(jnp.float32)

    def grad(axis):
        minus = jnp.roll(x, -1, axis) - x
        plus = x - jnp.roll(x, 1, axis)
        return jnp.abs(minus) + jnp.abs(plus)

    gx, gy, gz = grad(2), grad(3), grad(4)
    mag = jnp.sqrt(jnp.clip(gx ** 2 + gy ** 2 + gz ** 2, 1e-5, 1000.0))
    sel = x > 0.001
    val = mag ** 2
    return jnp.sum(jnp.where(sel, val, 0.0)) / jnp.sum(sel).astype(jnp.float32)


if __name__ == "__main__":
    key = jax.random.PRNGKey(0)
    n, c, d, h, w = 2, 2, 16, 16, 16
    x = jax.random.uniform(key, (n, c, d, h, w), jnp.float32, minval=-0.5, maxval=1.0)
    mask = jnp.ones((n, c, d, h, w), jnp.float32)   # unused; present for signature parity

    out_auto = gradient_loss(x, mask)               # auto D tile (single tile at this size)
    out_tiled = gradient_loss(x, mask, tile_d=8)    # exercises D tiling + circular halos
    jax.block_until_ready((out_auto, out_tiled))

    ref = _reference(x)
    assert jnp.allclose(out_auto, ref, rtol=1e-4, atol=1e-6), (out_auto, ref)
    assert jnp.allclose(out_tiled, ref, rtol=1e-4, atol=1e-6), (out_tiled, ref)
    print("KERNEL_OK")
</pallas_src>

<mosaic_0001>
module attributes {stable_mosaic.version = 11 : i64} {
  func.func @_roll_probe_kernel(%arg0: memref<8x128xf32, #tpu.memory_space<vmem>>, %arg1: memref<8x128xf32, #tpu.memory_space<vmem>>) attributes {dimension_semantics = [], scalar_prefetch = 0 : i64, scratch_operands = 0 : i64, tpu.core_type = #tpu.core_type<tc>} {
    %c0 = arith.constant 0 : index
    %c0_0 = arith.constant 0 : index
    %0 = vector.load %arg0[%c0, %c0_0] : memref<8x128xf32, #tpu.memory_space<vmem>>, vector<8x128xf32>
    %c1_i32 = arith.constant 1 : i32
    %1 = tpu.dynamic_rotate %0 by %c1_i32 dim 1 : vector<8x128xf32>, i32 -> vector<8x128xf32>
    %c0_1 = arith.constant 0 : index
    %c0_2 = arith.constant 0 : index
    %2 = vector.load %arg1[%c0_1, %c0_2] : memref<8x128xf32, #tpu.memory_space<vmem>>, vector<8x128xf32>
    tpu.vector_store %arg1[%c0_1, %c0_2], %1 {strides = array<i32>} : memref<8x128xf32, #tpu.memory_space<vmem>>, vector<8x128xf32>,
    return
  }
}

</mosaic_0001>

<llo_original>
// kernel: tpu_custom_call.1
$region0: #{tpu_custom_call.1}
  #allocation0 [shape = 'u32[]', space=smem, size = 0x4, offset = 0x4, fixed_abs, tag = 'smem constant byte address 0x4 - core index']
  #allocation1 [shape = 'u32[144,128]{1,0:T(1,128)}', space=vmem, size = 0x12000, scoped, tag = 'internal scratch']
  %s0 = inlined_call_operand.hbm [shape: f32[8,128], index: 0, kind: input, shape index: {}]
  %s1 = inlined_call_operand.hbm [shape: f32[8,128], index: 1, kind: output, shape index: {}]
  %s2 = sld [smem:[#allocation0]]
  $region18: #{tpu_custom_call.1} parent=0
    _
  %s4 = ssub.s32 1, %s2
  %s5 = scalar_select 0, %s4, %s2
  $region1: #{tpu_custom_call.1} parent=0
    #allocation2 [shape = 'u8[4096]{0}', space=vmem, size = 0x1000, scoped, tag = 'input window, operand 0, single buffered']
    #allocation3 [shape = 's32[1]{0}', space=sflag, size = 0x4, scoped, tag = 'scoped memory for tpu_custom_call.1']
    #allocation4 [shape = 's32[1]{0}', space=sflag, size = 0x4, scoped, tag = 'scoped memory for tpu_custom_call.1']
    #allocation5 [shape = 'u8[4096]{0}', space=vmem, size = 0x1000, scoped, tag = 'output window, operand 0, single buffered']
    %6 = vsyncpa [#allocation3], 0
    %7 = vsyncpa [#allocation4], 0
    // Predicated region
    $region2: #{tpu_custom_call.1} parent=1 // pred_check
      _
    $region3: #{tpu_custom_call.1} parent=1 // pred_check_branch
      %9 = sbr.rel (0) target = $region5
    $region4: #{tpu_custom_call.1} parent=1 // pred_region
      %s11 = ssub.s32 128, 128
      %12 = vsyncadd [#allocation3], %s11
      %s14 = sshll.u32 [#allocation2], 4
      %s15 = int_to_ptr.vmem [resolvable:$true] %s14
      %17 = dma.hbm_to_vmem [thread:$0]  %s0, 128, %s15, [#allocation3]
    $region5: #{tpu_custom_call.1} parent=1 // pred_fallthru
      _
    // Predicated region
    $region6: #{tpu_custom_call.1} parent=1 // pred_check
      _
    $region7: #{tpu_custom_call.1} parent=1 // pred_check_branch
      %19 = sbr.rel (0) target = $region9
    $region8: #{tpu_custom_call.1} parent=1 // pred_region
      %20 = dma.done [#allocation3], 128
    $region9: #{tpu_custom_call.1} parent=1 // pred_fallthru
      _
    %v21 = vld [vmem:[#allocation2] sm:$0xff]
    %22 = vrot.lane.b32.xlu0 %v21, 1
    %v23 = vpop.permute.xlu0 %22
    %24 = vst [vmem:[#allocation5] sm:$0xff] %v23
    // Predicated region
    $region10: #{tpu_custom_call.1} parent=1 // pred_check
      _
    $region11: #{tpu_custom_call.1} parent=1 // pred_check_branch
      %26 = sbr.rel (0) target = $region13
    $region12: #{tpu_custom_call.1} parent=1 // pred_region
      %s28 = ssub.s32 128, 128
      %29 = vsyncadd [#allocation4], %s28
      %s31 = sshll.u32 [#allocation5], 4
      %s32 = int_to_ptr.vmem [resolvable:$true] %s31
      %34 = dma.vmem_to_hbm [thread:$0]  %s32, 128, %s1, [#allocation4]
    $region13: #{tpu_custom_call.1} parent=1 // pred_fallthru
      _
    // Predicated region
    $region14: #{tpu_custom_call.1} parent=1 // pred_check
      _
    $region15: #{tpu_custom_call.1} parent=1 // pred_check_branch
      %36 = sbr.rel (0) target = $region17
    $region16: #{tpu_custom_call.1} parent=1 // pred_region
      %37 = dma.done [#allocation4], 128
    $region17: #{tpu_custom_call.1} parent=1 // pred_fallthru
      _
    %38 = vsyncpa [#allocation3], 1
    %39 = vsyncpa [#allocation4], 1

</llo_original>
